<compile_context>
chip_gen: v6e
topology: v6e:2x2x1
jax: 0.10.0
libtpu: 0.0.40
codegen_flags: <defaults>
</compile_context>

<pallas_src>
import jax
import jax.numpy as jnp
from jax import lax
from jax.experimental import pallas as pl
from jax.experimental.pallas import tpu as pltpu


def _round_up(a, b):
    return ((a + b - 1) // b) * b


def ffn_kernel(xT_ref, w1t_ref, w2t_ref, b123_ref, b3_ref, o_ref):
    # xT_ref  : (CPT, IN, CH)  VMEM  streamed batch tile, chunked (batch on lanes)
    # w1t_ref : (H, IN)        VMEM  resident (W1 transposed)
    # w2t_ref : (H, H)         VMEM  resident (W2 transposed)
    # b123_ref: (H, 3)         VMEM  resident: col0=b1, col1=b2, col2=w3
    # b3_ref  : (1,)           SMEM  output-layer bias scalar
    # o_ref   : (CPT, 1, CH)   VMEM  lane-dense output tile
    n_chunks = xT_ref.shape[0]
    hidden, in_size = w1t_ref.shape

    # Hoisted, VMEM-resident parameters (loaded once per grid step).
    w1t = w1t_ref[...]
    w2t = w2t_ref[...]
    b1c = b123_ref[:, 0:1]          # (H, 1)
    b2c = b123_ref[:, 1:2]          # (H, 1)
    w3c = b123_ref[:, 2:3]          # (H, 1)
    b3 = b3_ref[0]

    def chunk_body(c, carry):
        x_c = xT_ref[c]             # (IN, CH) — vreg-sized working set

        # Layer 1: relu(W1 x + b1) as IN unrolled VPU broadcast-FMAs.
        h = b1c + w1t[:, 0:1] * x_c[0:1, :]
        for k in range(1, in_size):
            h = h + w1t[:, k:k + 1] * x_c[k:k + 1, :]
        h = jnp.maximum(h, 0.0)     # Dropout(p=0.5) = identity in eval mode

        # Layer 2: relu(W2 h + b2), H unrolled broadcast-FMAs.
        g = b2c + w2t[:, 0:1] * h[0:1, :]
        for k in range(1, hidden):
            g = g + w2t[:, k:k + 1] * h[k:k + 1, :]
        g = jnp.maximum(g, 0.0)     # Dropout(p=0.5) = identity in eval mode

        # Output layer (out_size == 1): one vmul over the (H, CH) tile + a
        # cross-sublane reduction (XLU) instead of a scalar loop on a (1, CH) acc.
        z = jnp.sum(g * w3c, axis=0, keepdims=True) + b3       # (1, CH)

        o_ref[c] = (jax.nn.sigmoid(z) * 100.0).astype(o_ref.dtype)
        return carry

    lax.fori_loop(0, n_chunks, chunk_body, 0, unroll=(n_chunks <= 8))


def _ffn_reference(x, w1, b1, w2, b2, w3, b3):
    h = jnp.maximum(x @ w1 + b1, 0.0)
    h = jnp.maximum(h @ w2 + b2, 0.0)
    return jax.nn.sigmoid(h @ w3 + b3) * 100.0


def ffn_forward(x, w1, b1, w2, b2, w3, b3, *, max_tile=16384, chunk=1024,
                min_pallas_batch=512, force_pallas=False):
    """x: (batch, input_size). Weights stored as [in, out]; biases as (1, out)."""
    batch, in_size = x.shape
    hidden = w1.shape[1]
    out_size = w3.shape[1]
    assert out_size == 1, "kernel is specialized for the module's output_size=1 regression head"

    # Tiny batches: the kernel would be pure launch/prologue overhead — use plain XLA.
    if batch < min_pallas_batch and not force_pallas:
        return _ffn_reference(x.astype(jnp.float32), w1, b1, w2, b2, w3, b3)

    lane = 128
    chunk = max(lane, _round_up(chunk, lane))          # inner chunk: multiple of 128 lanes
    n_chunks_needed = -(-batch // chunk)
    chunks_per_tile = max(1, min(max_tile // chunk, n_chunks_needed))
    if n_chunks_needed > 1:
        # Keep >= 2 grid steps: v7x dual-TC sharding + pipeline prologue/epilogue overlap.
        chunks_per_tile = min(chunks_per_tile, max(1, -(-n_chunks_needed // 2)))
    tile = chunks_per_tile * chunk
    batch_p = _round_up(batch, tile)
    n_tiles = batch_p // tile
    n_chunks_total = batch_p // chunk

    # Lane-major layout plumbing (single fused pad+reshape+transpose in the wrapper).
    xp = jnp.pad(x.astype(jnp.float32), ((0, batch_p - batch), (0, 0)))        # (Bp, IN)
    xT3 = xp.reshape(n_chunks_total, chunk, in_size).transpose(0, 2, 1)        # (NC, IN, CH)

    w1t = w1.astype(jnp.float32).T                                             # (H, IN)
    w2t = w2.astype(jnp.float32).T                                             # (H, H)
    b123 = jnp.stack(
        [b1.reshape(hidden), b2.reshape(hidden), w3.reshape(hidden)], axis=1
    ).astype(jnp.float32)                                                      # (H, 3)
    b3v = b3.reshape(1).astype(jnp.float32)                                    # (1,)

    out = pl.pallas_call(
        ffn_kernel,
        out_shape=jax.ShapeDtypeStruct((n_chunks_total, 1, chunk), jnp.float32),
        grid=(n_tiles,),
        in_specs=[
            # streamed, chunked activation tile: batch on the lane axis
            pl.BlockSpec((chunks_per_tile, in_size, chunk), lambda i: (i, 0, 0)),
            # resident weights / packed biases (constant index_map -> fetched once)
            pl.BlockSpec((hidden, in_size), lambda i: (0, 0)),
            pl.BlockSpec((hidden, hidden), lambda i: (0, 0)),
            pl.BlockSpec((hidden, 3), lambda i: (0, 0)),
            # scalar output bias in SMEM
            pl.BlockSpec(memory_space=pltpu.MemorySpace.SMEM),
        ],
        out_specs=pl.BlockSpec((chunks_per_tile, 1, chunk), lambda i: (i, 0, 0)),
        compiler_params=pltpu.CompilerParams(
            dimension_semantics=("parallel",),
        ),
    )(xT3, w1t, w2t, b123, b3v)

    return out.reshape(batch_p)[:batch].reshape(batch, out_size)


def init_params(key, input_size=4, hidden_size=10, output_size=1):
    # Deterministic synthetic init (PyTorch-Linear-style uniform bounds).
    ks = jax.random.split(key, 6)

    def linear(kw, kb, fan_in, fan_out):
        bound = 1.0 / jnp.sqrt(fan_in)
        w = jax.random.uniform(kw, (fan_in, fan_out), jnp.float32, -bound, bound)
        b = jax.random.uniform(kb, (1, fan_out), jnp.float32, -bound, bound)
        return w, b

    w1, b1 = linear(ks[0], ks[1], input_size, hidden_size)
    w2, b2 = linear(ks[2], ks[3], hidden_size, hidden_size)
    w3, b3 = linear(ks[4], ks[5], hidden_size, output_size)
    return w1, b1, w2, b2, w3, b3


if __name__ == "__main__":
    key = jax.random.PRNGKey(0)
    k_x, k_p, k_x2 = jax.random.split(key, 3)

    batch, input_size, hidden_size, output_size = 8, 4, 10, 1
    params = init_params(k_p, input_size, hidden_size, output_size)

    # (1) Tiny batch, forced through the Pallas path (small tiles so the kernel runs).
    x = jax.random.normal(k_x, (batch, input_size), jnp.float32)
    out = ffn_forward(x, *params, chunk=128, max_tile=256, force_pallas=True)
    jax.block_until_ready(out)
    ref = _ffn_reference(x, *params)
    assert out.shape == (batch, output_size)
    assert jnp.allclose(out, ref, atol=1e-4, rtol=1e-4)

    # (2) Medium batch exercising multiple grid tiles + the in-kernel chunk loop.
    x2 = jax.random.normal(k_x2, (1000, input_size), jnp.float32)
    out2 = ffn_forward(x2, *params, chunk=128, max_tile=512, force_pallas=True)
    jax.block_until_ready(out2)
    ref2 = _ffn_reference(x2, *params)
    assert out2.shape == (1000, output_size)
    assert jnp.allclose(out2, ref2, atol=1e-4, rtol=1e-4)

    print("KERNEL_OK")
</pallas_src>

<mosaic_0001>
module attributes {stable_mosaic.version = 11 : i64} {
  func.func @ffn_kernel(%arg0: i32, %arg1: memref<1x4x128xf32, #tpu.memory_space<vmem>>, %arg2: memref<10x4xf32, #tpu.memory_space<vmem>>, %arg3: memref<10x10xf32, #tpu.memory_space<vmem>>, %arg4: memref<10x3xf32, #tpu.memory_space<vmem>>, %arg5: memref<1xf32, #tpu.memory_space<smem>>, %arg6: memref<1x1x128xf32, #tpu.memory_space<vmem>>) attributes {dimension_semantics = [#tpu.dimension_semantics<parallel>], iteration_bounds = array<i64: 1>, scalar_prefetch = 0 : i64, scratch_operands = 0 : i64, tpu.core_type = #tpu.core_type<tc>, window_params = [{transform_indices = @transform_0, window_bounds = array<i64: 1, 4, 128>}, {pipeline_mode = #tpu.pipeline_mode<synchronous>, transform_indices = @transform_1, window_bounds = array<i64: 10, 4>}, {pipeline_mode = #tpu.pipeline_mode<synchronous>, transform_indices = @transform_2, window_bounds = array<i64: 10, 10>}, {pipeline_mode = #tpu.pipeline_mode<synchronous>, transform_indices = @transform_3, window_bounds = array<i64: 10, 3>}, {transform_indices = @transform_4, window_bounds = array<i64: 1>}, {transform_indices = @transform_5, window_bounds = array<i64: 1, 1, 128>}]} {
    %c0 = arith.constant 0 : index
    %c0_0 = arith.constant 0 : index
    %0 = vector.load %arg2[%c0, %c0_0] : memref<10x4xf32, #tpu.memory_space<vmem>>, vector<10x4xf32>
    %c0_1 = arith.constant 0 : index
    %c0_2 = arith.constant 0 : index
    %1 = vector.load %arg3[%c0_1, %c0_2] : memref<10x10xf32, #tpu.memory_space<vmem>>, vector<10x10xf32>
    %c0_3 = arith.constant 0 : index
    %c0_4 = arith.constant 0 : index
    %2 = vector.load %arg4[%c0_3, %c0_4] : memref<10x3xf32, #tpu.memory_space<vmem>>, vector<10x1xf32>
    %c0_5 = arith.constant 0 : index
    %c1 = arith.constant 1 : index
    %3 = vector.load %arg4[%c0_5, %c1] : memref<10x3xf32, #tpu.memory_space<vmem>>, vector<10x1xf32>
    %c0_6 = arith.constant 0 : index
    %c2 = arith.constant 2 : index
    %4 = vector.load %arg4[%c0_6, %c2] : memref<10x3xf32, #tpu.memory_space<vmem>>, vector<10x1xf32>
    %c0_7 = arith.constant 0 : index
    %5 = memref.load %arg5[%c0_7] : memref<1xf32, #tpu.memory_space<smem>>
    %c0_i32 = arith.constant 0 : i32
    %6 = arith.index_cast %c0_i32 : i32 to index
    %c0_8 = arith.constant 0 : index
    %c0_9 = arith.constant 0 : index
    %7 = vector.load %arg1[%6, %c0_8, %c0_9] : memref<1x4x128xf32, #tpu.memory_space<vmem>>, vector<1x4x128xf32>
    %8 = vector.shape_cast %7 : vector<1x4x128xf32> to vector<4x128xf32>
    %9 = vector.extract_strided_slice %0 {offsets = [0, 0], sizes = [10, 1], strides = [1, 1]} : vector<10x4xf32> to vector<10x1xf32>
    %10 = vector.extract_strided_slice %8 {offsets = [0, 0], sizes = [1, 128], strides = [1, 1]} : vector<4x128xf32> to vector<1x128xf32>
    %11 = vector.broadcast %9 : vector<10x1xf32> to vector<10x128xf32>
    %12 = vector.broadcast %10 : vector<1x128xf32> to vector<10x128xf32>
    %13 = arith.mulf %11, %12 : vector<10x128xf32>
    %14 = vector.broadcast %2 : vector<10x1xf32> to vector<10x128xf32>
    %15 = arith.addf %14, %13 : vector<10x128xf32>
    %16 = vector.extract_strided_slice %0 {offsets = [0, 1], sizes = [10, 1], strides = [1, 1]} : vector<10x4xf32> to vector<10x1xf32>
    %17 = vector.extract_strided_slice %8 {offsets = [1, 0], sizes = [1, 128], strides = [1, 1]} : vector<4x128xf32> to vector<1x128xf32>
    %18 = vector.broadcast %16 : vector<10x1xf32> to vector<10x128xf32>
    %19 = vector.broadcast %17 : vector<1x128xf32> to vector<10x128xf32>
    %20 = arith.mulf %18, %19 : vector<10x128xf32>
    %21 = arith.addf %15, %20 : vector<10x128xf32>
    %22 = vector.extract_strided_slice %0 {offsets = [0, 2], sizes = [10, 1], strides = [1, 1]} : vector<10x4xf32> to vector<10x1xf32>
    %23 = vector.extract_strided_slice %8 {offsets = [2, 0], sizes = [1, 128], strides = [1, 1]} : vector<4x128xf32> to vector<1x128xf32>
    %24 = vector.broadcast %22 : vector<10x1xf32> to vector<10x128xf32>
    %25 = vector.broadcast %23 : vector<1x128xf32> to vector<10x128xf32>
    %26 = arith.mulf %24, %25 : vector<10x128xf32>
    %27 = arith.addf %21, %26 : vector<10x128xf32>
    %28 = vector.extract_strided_slice %0 {offsets = [0, 3], sizes = [10, 1], strides = [1, 1]} : vector<10x4xf32> to vector<10x1xf32>
    %29 = vector.extract_strided_slice %8 {offsets = [3, 0], sizes = [1, 128], strides = [1, 1]} : vector<4x128xf32> to vector<1x128xf32>
    %30 = vector.broadcast %28 : vector<10x1xf32> to vector<10x128xf32>
    %31 = vector.broadcast %29 : vector<1x128xf32> to vector<10x128xf32>
    %32 = arith.mulf %30, %31 : vector<10x128xf32>
    %33 = arith.addf %27, %32 : vector<10x128xf32>
    %cst = arith.constant 0.000000e+00 : f32
    %34 = vector.broadcast %cst : f32 to vector<10x128xf32>
    %35 = arith.maximumf %33, %34 : vector<10x128xf32>
    %36 = vector.extract_strided_slice %1 {offsets = [0, 0], sizes = [10, 1], strides = [1, 1]} : vector<10x10xf32> to vector<10x1xf32>
    %37 = vector.extract_strided_slice %35 {offsets = [0, 0], sizes = [1, 128], strides = [1, 1]} : vector<10x128xf32> to vector<1x128xf32>
    %38 = vector.broadcast %36 : vector<10x1xf32> to vector<10x128xf32>
    %39 = vector.broadcast %37 : vector<1x128xf32> to vector<10x128xf32>
    %40 = arith.mulf %38, %39 : vector<10x128xf32>
    %41 = vector.broadcast %3 : vector<10x1xf32> to vector<10x128xf32>
    %42 = arith.addf %41, %40 : vector<10x128xf32>
    %43 = vector.extract_strided_slice %1 {offsets = [0, 1], sizes = [10, 1], strides = [1, 1]} : vector<10x10xf32> to vector<10x1xf32>
    %44 = vector.extract_strided_slice %35 {offsets = [1, 0], sizes = [1, 128], strides = [1, 1]} : vector<10x128xf32> to vector<1x128xf32>
    %45 = vector.broadcast %43 : vector<10x1xf32> to vector<10x128xf32>
    %46 = vector.broadcast %44 : vector<1x128xf32> to vector<10x128xf32>
    %47 = arith.mulf %45, %46 : vector<10x128xf32>
    %48 = arith.addf %42, %47 : vector<10x128xf32>
    %49 = vector.extract_strided_slice %1 {offsets = [0, 2], sizes = [10, 1], strides = [1, 1]} : vector<10x10xf32> to vector<10x1xf32>
    %50 = vector.extract_strided_slice %35 {offsets = [2, 0], sizes = [1, 128], strides = [1, 1]} : vector<10x128xf32> to vector<1x128xf32>
    %51 = vector.broadcast %49 : vector<10x1xf32> to vector<10x128xf32>
    %52 = vector.broadcast %50 : vector<1x128xf32> to vector<10x128xf32>
    %53 = arith.mulf %51, %52 : vector<10x128xf32>
    %54 = arith.addf %48, %53 : vector<10x128xf32>
    %55 = vector.extract_strided_slice %1 {offsets = [0, 3], sizes = [10, 1], strides = [1, 1]} : vector<10x10xf32> to vector<10x1xf32>
    %56 = vector.extract_strided_slice %35 {offsets = [3, 0], sizes = [1, 128], strides = [1, 1]} : vector<10x128xf32> to vector<1x128xf32>
    %57 = vector.broadcast %55 : vector<10x1xf32> to vector<10x128xf32>
    %58 = vector.broadcast %56 : vector<1x128xf32> to vector<10x128xf32>
    %59 = arith.mulf %57, %58 : vector<10x128xf32>
    %60 = arith.addf %54, %59 : vector<10x128xf32>
    %61 = vector.extract_strided_slice %1 {offsets = [0, 4], sizes = [10, 1], strides = [1, 1]} : vector<10x10xf32> to vector<10x1xf32>
    %62 = vector.extract_strided_slice %35 {offsets = [4, 0], sizes = [1, 128], strides = [1, 1]} : vector<10x128xf32> to vector<1x128xf32>
    %63 = vector.broadcast %61 : vector<10x1xf32> to vector<10x128xf32>
    %64 = vector.broadcast %62 : vector<1x128xf32> to vector<10x128xf32>
    %65 = arith.mulf %63, %64 : vector<10x128xf32>
    %66 = arith.addf %60, %65 : vector<10x128xf32>
    %67 = vector.extract_strided_slice %1 {offsets = [0, 5], sizes = [10, 1], strides = [1, 1]} : vector<10x10xf32> to vector<10x1xf32>
    %68 = vector.extract_strided_slice %35 {offsets = [5, 0], sizes = [1, 128], strides = [1, 1]} : vector<10x128xf32> to vector<1x128xf32>
    %69 = vector.broadcast %67 : vector<10x1xf32> to vector<10x128xf32>
    %70 = vector.broadcast %68 : vector<1x128xf32> to vector<10x128xf32>
    %71 = arith.mulf %69, %70 : vector<10x128xf32>
    %72 = arith.addf %66, %71 : vector<10x128xf32>
    %73 = vector.extract_strided_slice %1 {offsets = [0, 6], sizes = [10, 1], strides = [1, 1]} : vector<10x10xf32> to vector<10x1xf32>
    %74 = vector.extract_strided_slice %35 {offsets = [6, 0], sizes = [1, 128], strides = [1, 1]} : vector<10x128xf32> to vector<1x128xf32>
    %75 = vector.broadcast %73 : vector<10x1xf32> to vector<10x128xf32>
    %76 = vector.broadcast %74 : vector<1x128xf32> to vector<10x128xf32>
    %77 = arith.mulf %75, %76 : vector<10x128xf32>
    %78 = arith.addf %72, %77 : vector<10x128xf32>
    %79 = vector.extract_strided_slice %1 {offsets = [0, 7], sizes = [10, 1], strides = [1, 1]} : vector<10x10xf32> to vector<10x1xf32>
    %80 = vector.extract_strided_slice %35 {offsets = [7, 0], sizes = [1, 128], strides = [1, 1]} : vector<10x128xf32> to vector<1x128xf32>
    %81 = vector.broadcast %79 : vector<10x1xf32> to vector<10x128xf32>
    %82 = vector.broadcast %80 : vector<1x128xf32> to vector<10x128xf32>
    %83 = arith.mulf %81, %82 : vector<10x128xf32>
    %84 = arith.addf %78, %83 : vector<10x128xf32>
    %85 = vector.extract_strided_slice %1 {offsets = [0, 8], sizes = [10, 1], strides = [1, 1]} : vector<10x10xf32> to vector<10x1xf32>
    %86 = vector.extract_strided_slice %35 {offsets = [8, 0], sizes = [1, 128], strides = [1, 1]} : vector<10x128xf32> to vector<1x128xf32>
    %87 = vector.broadcast %85 : vector<10x1xf32> to vector<10x128xf32>
    %88 = vector.broadcast %86 : vector<1x128xf32> to vector<10x128xf32>
    %89 = arith.mulf %87, %88 : vector<10x128xf32>
    %90 = arith.addf %84, %89 : vector<10x128xf32>
    %91 = vector.extract_strided_slice %1 {offsets = [0, 9], sizes = [10, 1], strides = [1, 1]} : vector<10x10xf32> to vector<10x1xf32>
    %92 = vector.extract_strided_slice %35 {offsets = [9, 0], sizes = [1, 128], strides = [1, 1]} : vector<10x128xf32> to vector<1x128xf32>
    %93 = vector.broadcast %91 : vector<10x1xf32> to vector<10x128xf32>
    %94 = vector.broadcast %92 : vector<1x128xf32> to vector<10x128xf32>
    %95 = arith.mulf %93, %94 : vector<10x128xf32>
    %96 = arith.addf %90, %95 : vector<10x128xf32>
    %cst_10 = arith.constant 0.000000e+00 : f32
    %97 = vector.broadcast %cst_10 : f32 to vector<10x128xf32>
    %98 = arith.maximumf %96, %97 : vector<10x128xf32>
    %99 = vector.broadcast %4 : vector<10x1xf32> to vector<10x128xf32>
    %100 = arith.mulf %98, %99 : vector<10x128xf32>
    %cst_11 = arith.constant dense<0.000000e+00> : vector<128xf32>
    %101 = vector.multi_reduction <add>, %100, %cst_11 [0] : vector<10x128xf32> to vector<128xf32>
    %102 = vector.shape_cast %101 : vector<128xf32> to vector<1x128xf32>
    %103 = vector.broadcast %5 : f32 to vector<1x128xf32>
    %104 = arith.addf %102, %103 : vector<1x128xf32>
    %105 = arith.negf %104 : vector<1x128xf32>
    %106 = math.exp %105 : vector<1x128xf32>
    %cst_12 = arith.constant 1.000000e+00 : f32
    %107 = vector.broadcast %cst_12 : f32 to vector<1x128xf32>
    %108 = arith.addf %107, %106 : vector<1x128xf32>
    %109 = arith.divf %107, %108 : vector<1x128xf32>
    %cst_13 = arith.constant 1.000000e+02 : f32
    %110 = vector.broadcast %cst_13 : f32 to vector<1x128xf32>
    %111 = arith.mulf %109, %110 : vector<1x128xf32>
    %112 = arith.index_cast %c0_i32 : i32 to index
    %c0_14 = arith.constant 0 : index
    %c0_15 = arith.constant 0 : index
    %113 = vector.load %arg6[%112, %c0_14, %c0_15] : memref<1x1x128xf32, #tpu.memory_space<vmem>>, vector<1x1x128xf32>
    %114 = vector.shape_cast %113 : vector<1x1x128xf32> to vector<1x128xf32>
    %115 = vector.shape_cast %111 : vector<1x128xf32> to vector<1x1x128xf32>
    tpu.vector_store %arg6[%112, %c0_14, %c0_15], %115 {strides = array<i32>} : memref<1x1x128xf32, #tpu.memory_space<vmem>>, vector<1x1x128xf32>,
    %c1_i32 = arith.constant 1 : i32
    return
  }
  func.func @transform_0(%arg0: i32) -> (i32, i32, i32) {
    %c0_i32 = arith.constant 0 : i32
    %c0_i32_0 = arith.constant 0 : i32
    %c0_i32_1 = arith.constant 0 : i32
    return %arg0, %c0_i32, %c0_i32_0 : i32, i32, i32
  }
  func.func @transform_1(%arg0: i32) -> (i32, i32) {
    %c0_i32 = arith.constant 0 : i32
    %c0_i32_0 = arith.constant 0 : i32
    %c0_i32_1 = arith.constant 0 : i32
    return %c0_i32, %c0_i32_0 : i32, i32
  }
  func.func @transform_2(%arg0: i32) -> (i32, i32) {
    %c0_i32 = arith.constant 0 : i32
    %c0_i32_0 = arith.constant 0 : i32
    %c0_i32_1 = arith.constant 0 : i32
    return %c0_i32, %c0_i32_0 : i32, i32
  }
  func.func @transform_3(%arg0: i32) -> (i32, i32) {
    %c0_i32 = arith.constant 0 : i32
    %c0_i32_0 = arith.constant 0 : i32
    %c0_i32_1 = arith.constant 0 : i32
    return %c0_i32, %c0_i32_0 : i32, i32
  }
  func.func @transform_4(%arg0: i32) -> i32 {
    %c0_i32 = arith.constant 0 : i32
    %c0_i32_0 = arith.constant 0 : i32
    return %c0_i32 : i32
  }
  func.func @transform_5(%arg0: i32) -> (i32, i32, i32) {
    %c0_i32 = arith.constant 0 : i32
    %c0_i32_0 = arith.constant 0 : i32
    %c0_i32_1 = arith.constant 0 : i32
    return %arg0, %c0_i32, %c0_i32_0 : i32, i32, i32
  }
}

</mosaic_0001>

<llo_original>
// kernel: tpu_custom_call.1
$region0: #{tpu_custom_call.1}
  #allocation0 [shape = 'u32[]', space=smem, size = 0x4, offset = 0x4, fixed_abs, tag = 'smem constant byte address 0x4 - core index']
  #allocation1 [shape = 'u32[144,128]{1,0:T(1,128)}', space=vmem, size = 0x12000, scoped, tag = 'internal scratch']
  #allocation2 [shape = 'f32[1]{0:T(128)S(6)}', space=smem, size = 0x200, scoped, tag = 'scoped memory for tpu_custom_call.1']
  %s0 = inlined_call_operand.vmem [shape: f32[1,4,128], index: 0, kind: input, shape index: {}]
  %s1 = inlined_call_operand.vmem [shape: f32[10,4], index: 1, kind: input, shape index: {}]
  %s2 = inlined_call_operand.vmem [shape: f32[10,10], index: 2, kind: input, shape index: {}]
  %s3 = inlined_call_operand.vmem [shape: f32[10,3], index: 3, kind: input, shape index: {}]
  %s4 = inlined_call_operand.<no memory space> [shape: f32[1], index: 4, kind: input, shape index: {}]
  %s5 = inlined_call_operand.hbm [shape: f32[1,1,128], index: 5, kind: output, shape index: {}]
  %s6 = sld [smem:[#allocation0]]
  $region30: #{tpu_custom_call.1} parent=0
    _
  %s8 = ssub.s32 1, %s6
  %s9 = scalar_select 0, %s8, %s6
  %10 = sst [smem:[#allocation2]] %s4
  $region1: #{tpu_custom_call.1} parent=0
    #allocation3 [shape = 'u8[512]{0}', space=vmem, size = 0x400, scoped, tag = 'output window, operand 0, single buffered']
    #allocation4 [shape = 's32[1]{0}', space=sflag, size = 0x4, scoped, tag = 'scoped memory for tpu_custom_call.1']
    %11 = vsyncpa [#allocation4], 0
    // Predicated region
    $region2: #{tpu_custom_call.1} parent=1 // pred_check
      _
    $region3: #{tpu_custom_call.1} parent=1 // pred_check_branch
      %13 = sbr.rel (0) target = $region5
    $region4: #{tpu_custom_call.1} parent=1 // pred_region
      _
    $region5: #{tpu_custom_call.1} parent=1 // pred_fallthru
      _
    // Predicated region
    $region6: #{tpu_custom_call.1} parent=1 // pred_check
      _
    $region7: #{tpu_custom_call.1} parent=1 // pred_check_branch
      %15 = sbr.rel (0) target = $region9
    $region8: #{tpu_custom_call.1} parent=1 // pred_region
      _
    $region9: #{tpu_custom_call.1} parent=1 // pred_fallthru
      _
    // Predicated region
    $region10: #{tpu_custom_call.1} parent=1 // pred_check
      _
    $region11: #{tpu_custom_call.1} parent=1 // pred_check_branch
      %17 = sbr.rel (0) target = $region13
    $region12: #{tpu_custom_call.1} parent=1 // pred_region
      _
    $region13: #{tpu_custom_call.1} parent=1 // pred_fallthru
      _
    // Predicated region
    $region14: #{tpu_custom_call.1} parent=1 // pred_check
      _
    $region15: #{tpu_custom_call.1} parent=1 // pred_check_branch
      %19 = sbr.rel (0) target = $region17
    $region16: #{tpu_custom_call.1} parent=1 // pred_region
      _
    $region17: #{tpu_custom_call.1} parent=1 // pred_fallthru
      _
    // Predicated region
    $region18: #{tpu_custom_call.1} parent=1 // pred_check
      _
    $region19: #{tpu_custom_call.1} parent=1 // pred_check_branch
      %21 = sbr.rel (0) target = $region21
    $region20: #{tpu_custom_call.1} parent=1 // pred_region
      _
    $region21: #{tpu_custom_call.1} parent=1 // pred_fallthru
      _
    %v22 = vld [vmem:[%s1] sm:$0xff]
    %v23 = vld [vmem:[%s1 + $0x8] sm:$0x3]
    %v24 = vld [vmem:[%s2] sm:$0xff]
    %v25 = vld [vmem:[%s2 + $0x8] sm:$0x3]
    %v26 = vld [vmem:[%s3] sm:$0xff]
    %v27 = vld [vmem:[%s3 + $0x8] sm:$0x3]
    %s28 = sld [smem:[#allocation2]]
    %v29 = vld [vmem:[%s0] sm:$0xf]
    %31 = vset.pattern.permute.xlu0 0
    %32 = vperm.xlu0 %31, %v22
    %v33 = vpop.permute.xlu0 %32
    %36 = vset.pattern.permute.xlu0 0
    %37 = vperm.xlu0 %36, %v23
    %v38 = vpop.permute.xlu0 %37
    %v40 = vlaneseq
    %v41 = vshrl.u32 %v40, 7
    %v42 = vsub.s32 0, %v41
    %v43 = vrot.slane %v29, %v42
    %v44 = vmul.f32 %v33, %v43
    %v45 = vmul.f32 %v38, %v43
    %47 = vset.pattern.permute.xlu0 0
    %48 = vperm.xlu0 %47, %v26
    %v49 = vpop.permute.xlu0 %48
    %52 = vset.pattern.permute.xlu0 0
    %53 = vperm.xlu0 %52, %v27
    %v54 = vpop.permute.xlu0 %53
    %v56 = vadd.f32 %v49, %v44
    %v57 = vadd.f32 %v54, %v45
    %58 = vset.pattern.permute.xlu0 1
    %59 = vperm.xlu0 %58, %v22
    %v60 = vpop.permute.xlu0 %59
    %62 = vset.pattern.permute.xlu0 1
    %63 = vperm.xlu0 %62, %v23
    %v64 = vpop.permute.xlu0 %63
    %v66 = vlaneseq
    %v67 = vshrl.u32 %v66, 7
    %v68 = vsub.s32 1, %v67
    %v69 = vrot.slane %v29, %v68
    %v70 = vmul.f32 %v60, %v69
    %v71 = vmul.f32 %v64, %v69
    %v72 = vadd.f32 %v56, %v70
    %v73 = vadd.f32 %v57, %v71
    %74 = vset.pattern.permute.xlu0 2
    %75 = vperm.xlu0 %74, %v22
    %v76 = vpop.permute.xlu0 %75
    %78 = vset.pattern.permute.xlu0 2
    %79 = vperm.xlu0 %78, %v23
    %v80 = vpop.permute.xlu0 %79
    %v82 = vlaneseq
    %v83 = vshrl.u32 %v82, 7
    %v84 = vsub.s32 2, %v83
    %v85 = vrot.slane %v29, %v84
    %v86 = vmul.f32 %v76, %v85
    %v87 = vmul.f32 %v80, %v85
    %v88 = vadd.f32 %v72, %v86
    %v89 = vadd.f32 %v73, %v87
    %90 = vset.pattern.permute.xlu0 3
    %91 = vperm.xlu0 %90, %v22
    %v92 = vpop.permute.xlu0 %91
    %94 = vset.pattern.permute.xlu0 3
    %95 = vperm.xlu0 %94, %v23
    %v96 = vpop.permute.xlu0 %95
    %v98 = vlaneseq
    %v99 = vshrl.u32 %v98, 7
    %v100 = vsub.s32 3, %v99
    %v101 = vrot.slane %v29, %v100
    %v102 = vmul.f32 %v92, %v101
    %v103 = vmul.f32 %v96, %v101
    %v104 = vadd.f32 %v88, %v102
    %v105 = vadd.f32 %v89, %v103
    %v106 = vmax.f32 %v104, 0.0
    %v107 = vmax.f32 %v105, 0.0
    %109 = vset.pattern.permute.xlu0 0
    %110 = vperm.xlu0 %109, %v24
    %v111 = vpop.permute.xlu0 %110
    %114 = vset.pattern.permute.xlu0 0
    %115 = vperm.xlu0 %114, %v25
    %v116 = vpop.permute.xlu0 %115
    %v118 = vlaneseq
    %v119 = vshrl.u32 %v118, 7
    %v120 = vsub.s32 0, %v119
    %v121 = vrot.slane %v106, %v120
    %v122 = vmul.f32 %v111, %v121
    %v123 = vmul.f32 %v116, %v121
    %124 = vset.pattern.permute.xlu0 1
    %125 = vperm.xlu0 %124, %v26
    %v126 = vpop.permute.xlu0 %125
    %128 = vset.pattern.permute.xlu0 1
    %129 = vperm.xlu0 %128, %v27
    %v130 = vpop.permute.xlu0 %129
    %v132 = vadd.f32 %v126, %v122
    %v133 = vadd.f32 %v130, %v123
    %134 = vset.pattern.permute.xlu0 1
    %135 = vperm.xlu0 %134, %v24
    %v136 = vpop.permute.xlu0 %135
    %138 = vset.pattern.permute.xlu0 1
    %139 = vperm.xlu0 %138, %v25
    %v140 = vpop.permute.xlu0 %139
    %v142 = vlaneseq
    %v143 = vshrl.u32 %v142, 7
    %v144 = vsub.s32 1, %v143
    %v145 = vrot.slane %v106, %v144
    %v146 = vmul.f32 %v136, %v145
    %v147 = vmul.f32 %v140, %v145
    %v148 = vadd.f32 %v132, %v146
    %v149 = vadd.f32 %v133, %v147
    %150 = vset.pattern.permute.xlu0 2
    %151 = vperm.xlu0 %150, %v24
    %v152 = vpop.permute.xlu0 %151
    %154 = vset.pattern.permute.xlu0 2
    %155 = vperm.xlu0 %154, %v25
    %v156 = vpop.permute.xlu0 %155
    %v158 = vlaneseq
    %v159 = vshrl.u32 %v158, 7
    %v160 = vsub.s32 2, %v159
    %v161 = vrot.slane %v106, %v160
    %v162 = vmul.f32 %v152, %v161
    %v163 = vmul.f32 %v156, %v161
    %v164 = vadd.f32 %v148, %v162
    %v165 = vadd.f32 %v149, %v163
    %166 = vset.pattern.permute.xlu0 3
    %167 = vperm.xlu0 %166, %v24
    %v168 = vpop.permute.xlu0 %167
    %170 = vset.pattern.permute.xlu0 3
    %171 = vperm.xlu0 %170, %v25
    %v172 = vpop.permute.xlu0 %171
    %v174 = vlaneseq
    %v175 = vshrl.u32 %v174, 7
    %v176 = vsub.s32 3, %v175
    %v177 = vrot.slane %v106, %v176
    %v178 = vmul.f32 %v168, %v177
    %v179 = vmul.f32 %v172, %v177
    %v180 = vadd.f32 %v164, %v178
    %v181 = vadd.f32 %v165, %v179
    %182 = vset.pattern.permute.xlu0 4
    %183 = vperm.xlu0 %182, %v24
    %v184 = vpop.permute.xlu0 %183
    %186 = vset.pattern.permute.xlu0 4
    %187 = vperm.xlu0 %186, %v25
    %v188 = vpop.permute.xlu0 %187
    %v190 = vlaneseq
    %v191 = vshrl.u32 %v190, 7
    %v192 = vsub.s32 4, %v191
    %v193 = vrot.slane %v106, %v192
    %v194 = vmul.f32 %v184, %v193
    %v195 = vmul.f32 %v188, %v193
    %v196 = vadd.f32 %v180, %v194
    %v197 = vadd.f32 %v181, %v195
    %198 = vset.pattern.permute.xlu0 5
    %199 = vperm.xlu0 %198, %v24
    %v200 = vpop.permute.xlu0 %199
    %202 = vset.pattern.permute.xlu0 5
    %203 = vperm.xlu0 %202, %v25
    %v204 = vpop.permute.xlu0 %203
    %v206 = vlaneseq
    %v207 = vshrl.u32 %v206, 7
    %v208 = vsub.s32 5, %v207
    %v209 = vrot.slane %v106, %v208
    %v210 = vmul.f32 %v200, %v209
    %v211 = vmul.f32 %v204, %v209
    %v212 = vadd.f32 %v196, %v210
    %v213 = vadd.f32 %v197, %v211
    %214 = vset.pattern.permute.xlu0 6
    %215 = vperm.xlu0 %214, %v24
    %v216 = vpop.permute.xlu0 %215
    %218 = vset.pattern.permute.xlu0 6
    %219 = vperm.xlu0 %218, %v25
    %v220 = vpop.permute.xlu0 %219
    %v222 = vlaneseq
    %v223 = vshrl.u32 %v222, 7
    %v224 = vsub.s32 6, %v223
    %v225 = vrot.slane %v106, %v224
    %v226 = vmul.f32 %v216, %v225
    %v227 = vmul.f32 %v220, %v225
    %v228 = vadd.f32 %v212, %v226
    %v229 = vadd.f32 %v213, %v227
    %230 = vset.pattern.permute.xlu0 7
    %231 = vperm.xlu0 %230, %v24
    %v232 = vpop.permute.xlu0 %231
    %234 = vset.pattern.permute.xlu0 7
    %235 = vperm.xlu0 %234, %v25
    %v236 = vpop.permute.xlu0 %235
    %v238 = vlaneseq
    %v239 = vshrl.u32 %v238, 7
    %v240 = vsub.s32 7, %v239
    %v241 = vrot.slane %v106, %v240
    %v242 = vmul.f32 %v232, %v241
    %v243 = vmul.f32 %v236, %v241
    %v244 = vadd.f32 %v228, %v242
    %v245 = vadd.f32 %v229, %v243
    %246 = vset.pattern.permute.xlu0 8
    %247 = vperm.xlu0 %246, %v24
    %v248 = vpop.permute.xlu0 %247
    %250 = vset.pattern.permute.xlu0 8
    %251 = vperm.xlu0 %250, %v25
    %v252 = vpop.permute.xlu0 %251
    %v254 = vlaneseq
    %v255 = vshrl.u32 %v254, 7
    %v256 = vsub.s32 0, %v255
    %v257 = vrot.slane %v107, %v256
    %v258 = vmul.f32 %v248, %v257
    %v259 = vmul.f32 %v252, %v257
    %v260 = vadd.f32 %v244, %v258
    %v261 = vadd.f32 %v245, %v259
    %262 = vset.pattern.permute.xlu0 9
    %263 = vperm.xlu0 %262, %v24
    %v264 = vpop.permute.xlu0 %263
    %266 = vset.pattern.permute.xlu0 9
    %267 = vperm.xlu0 %266, %v25
    %v268 = vpop.permute.xlu0 %267
    %v270 = vlaneseq
    %v271 = vshrl.u32 %v270, 7
    %v272 = vsub.s32 1, %v271
    %v273 = vrot.slane %v107, %v272
    %v274 = vmul.f32 %v264, %v273
    %v275 = vmul.f32 %v268, %v273
    %v276 = vadd.f32 %v260, %v274
    %v277 = vadd.f32 %v261, %v275
    %v278 = vmax.f32 %v276, 0.0
    %v279 = vmax.f32 %v277, 0.0
    %280 = vset.pattern.permute.xlu0 2
    %281 = vperm.xlu0 %280, %v26
    %v282 = vpop.permute.xlu0 %281
    %284 = vset.pattern.permute.xlu0 2
    %285 = vperm.xlu0 %284, %v27
    %v286 = vpop.permute.xlu0 %285
    %v288 = vmul.f32 %v278, %v282
    %v289 = vmul.f32 %v279, %v286
    %vm290 = vcmask 1041408
    %v291 = vsel %vm290, %v289, 0.0
    %v292 = vadd.f32 %v288, %v291
    %v293 = vrot.slane %v292, 4
    %v294 = vadd.f32 %v292, %v293
    %v295 = vrot.slane %v294, 2
    %v296 = vadd.f32 %v294, %v295
    %v297 = vrot.slane %v296, 1
    %v298 = vadd.f32 %v296, %v297
    %v299 = vstv %s28
    %v300 = vadd.f32 %v298, %v299
    %v301 = vxor.u32 %v300, 2147483648
    %v302 = vmul.f32 %v301, 1.442695
    %v303 = vpow.pop %v302
    %v304 = vadd.f32 %v303, 1.0
    %v305 = vrcp.pop %v304
    %v306 = vmul.f32 1.0, %v305
    %v307 = vmul.f32 %v306, 100.0
    %308 = vst [vmem:[#allocation3] sm:$0x1] %v307
    // Predicated region
    $region22: #{tpu_custom_call.1} parent=1 // pred_check
      _
    $region23: #{tpu_custom_call.1} parent=1 // pred_check_branch
      %310 = sbr.rel (0) target = $region25
    $region24: #{tpu_custom_call.1} parent=1 // pred_region
      %s312 = ssub.s32 16, 16
      %313 = vsyncadd [#allocation4], %s312
      %s315 = sshll.u32 [#allocation3], 4
      %s316 = int_to_ptr.vmem [resolvable:$true] %s315
      %318 = dma.vmem_to_hbm [thread:$0]  %s316, 16, %s5, [#allocation4]
    $region25: #{tpu_custom_call.1} parent=1 // pred_fallthru
      _
    // Predicated region
    $region26: #{tpu_custom_call.1} parent=1 // pred_check
      _
    $region27: #{tpu_custom_call.1} parent=1 // pred_check_branch
      %320 = sbr.rel (0) target = $region29
    $region28: #{tpu_custom_call.1} parent=1 // pred_region
      %321 = dma.done [#allocation4], 16
    $region29: #{tpu_custom_call.1} parent=1 // pred_fallthru
      _
    %322 = vsyncpa [#allocation4], 1

</llo_original>
